<compile_context>
chip_gen: v6e
topology: v6e:2x2x1
jax: 0.10.0
libtpu: 0.0.40
codegen_flags: <defaults>
</compile_context>

<pallas_src>
import functools

import jax
import jax.numpy as jnp
from jax.experimental import pallas as pl
from jax.experimental.pallas import tpu as pltpu


def _round_up(x, m):
    return (x + m - 1) // m * m


def _vmem_limit_bytes():
    try:
        cap = pltpu.get_tpu_info().vmem_capacity_bytes
    except Exception:
        cap = 64 * 1024 * 1024          # conservative (v7x per-TC VMEM)
    return int(cap * 0.9)


_VMEM_LIMIT = _vmem_limit_bytes()


def _pick_tile(dim, pref, align):
    """Largest tile <= pref that divides dim and is `align`-aligned (or full dim)."""
    if dim <= pref:
        return dim
    t = (pref // align) * align
    while t >= align:
        if dim % t == 0:
            return t
        t -= align
    return dim


def _pick_time_chunk(seq_len, pref=8):
    for t in range(min(pref, seq_len), 0, -1):
        if seq_len % t == 0:
            return t
    return 1


def _num_batch_shards(batch):
    # TODO(synk): query actual TensorCore count; 2 matches v7x megacore and is
    # a harmless serial split on v5e/v6e.
    if batch % 2 == 0 and (batch // 2) % 8 == 0:
        return 2
    return 1


def _weights_per_layer(cell_type, layer_idx):
    if cell_type == "GRU":
        return 2 if layer_idx == 0 else 4
    return 1 if layer_idx == 0 else 3


# ------------------------------ tiled linear ------------------------------- #

def _linear_kernel(x_ref, w_ref, b_ref, o_ref, *, activation):
    w = w_ref[...]
    y = jnp.dot(x_ref[...].astype(w.dtype), w,
                preferred_element_type=jnp.float32) + b_ref[...]
    if activation is not None:
        y = activation(y)
    o_ref[...] = y.astype(o_ref.dtype)


def tiled_linear(x, w, b, activation=None, tm_pref=256, tn_pref=512):
    """y = act(x @ w + b), tiled over (M, N); K stays resident per tile."""
    M, K = x.shape
    _, N = w.shape
    tm = _pick_tile(M, tm_pref, 8)
    tn = _pick_tile(N, tn_pref, 128)
    grid = (M // tm, N // tn)
    kernel = functools.partial(_linear_kernel, activation=activation)
    # TODO(synk): tile K as well (with an f32 accumulator) for very large K.
    return pl.pallas_call(
        kernel,
        out_shape=jax.ShapeDtypeStruct((M, N), jnp.float32),
        grid_spec=pltpu.PrefetchScalarGridSpec(
            num_scalar_prefetch=0,
            grid=grid,
            in_specs=[
                pl.BlockSpec((tm, K), lambda i, j: (i, 0)),
                pl.BlockSpec((K, tn), lambda i, j: (0, j)),
                pl.BlockSpec((1, tn), lambda i, j: (0, j)),
            ],
            out_specs=pl.BlockSpec((tm, tn), lambda i, j: (i, j)),
        ),
        compiler_params=pltpu.CompilerParams(
            dimension_semantics=("parallel", "parallel"),
            vmem_limit_bytes=_VMEM_LIMIT),
    )(x, w, b)


# --------------------------- fused recurrence kernel ------------------------ #

def make_fused_recurrence_kernel(cell_type, num_layers, hidden_p, t_chunk,
                                 compute_dtype):
    """Fused (time-chunk x layers) recurrence; one grid step == T_CHUNK steps."""
    n_w = sum(_weights_per_layer(cell_type, j) for j in range(num_layers))
    Hp = hidden_p

    def kernel(*refs):
        xpre_ref, h0_ref = refs[0], refs[1]
        w_refs = refs[2:2 + n_w]
        htop_ref = refs[2 + n_w]          # [t_chunk, Bs, Hp]
        hstate_ref = refs[3 + n_w]        # [L, Bs, Hp]   (resident output/state)

        tc = pl.program_id(1)

        @pl.when(tc == 0)
        def _():
            hstate_ref[...] = h0_ref[...]

        # Static per-layer weight grouping.
        layer_ws = []
        off = 0
        for j in range(num_layers):
            n = _weights_per_layer(cell_type, j)
            layer_ws.append(w_refs[off:off + n])
            off += n

        for tt in range(t_chunk):                    # static unroll over the chunk
            xpre = xpre_ref[tt]                      # [Bs, 3Hp] (GRU) / [Bs, Hp] (RNN)
            x = None
            for j in range(num_layers):              # static unroll over layers
                h = hstate_ref[j]                    # [Bs, Hp], f32
                ws = layer_ws[j]
                if cell_type == "GRU":
                    if j == 0:
                        w_urh, w_ch = ws
                        pre_x = xpre                 # hoisted x-side (bias folded)
                    else:
                        w_xall, b_all, w_urh, w_ch = ws
                        pre_x = jnp.dot(x.astype(compute_dtype), w_xall[...],
                                        preferred_element_type=jnp.float32) + b_all[...]
                    ur = jax.nn.sigmoid(
                        pre_x[:, :2 * Hp]
                        + jnp.dot(h.astype(compute_dtype), w_urh[...],
                                  preferred_element_type=jnp.float32))
                    u = ur[:, :Hp]
                    r = ur[:, Hp:]
                    cand = jnp.tanh(
                        pre_x[:, 2 * Hp:]
                        + jnp.dot((r * h).astype(compute_dtype), w_ch[...],
                                  preferred_element_type=jnp.float32))
                    h_new = u * h + (1.0 - u) * cand
                else:
                    if j == 0:
                        (w_h,) = ws
                        pre_x = xpre
                    else:
                        w_x, b, w_h = ws
                        pre_x = jnp.dot(x.astype(compute_dtype), w_x[...],
                                        preferred_element_type=jnp.float32) + b[...]
                    h_new = jnp.tanh(
                        pre_x + jnp.dot(h.astype(compute_dtype), w_h[...],
                                        preferred_element_type=jnp.float32))
                hstate_ref[j] = h_new
                x = h_new
            htop_ref[tt] = x                         # top-layer state for this step

    return kernel


def fused_recurrence(xpre0, h_init, cell_weights, cell_type, num_layers, hidden_p,
                     t_chunk, n_shards, compute_dtype):
    """xpre0: [seq, B, G]; h_init: [L, B, Hp] -> (h_top [seq,B,Hp], h_final [L,B,Hp])."""
    seq_len, batch, gate_width = xpre0.shape
    b_shard = batch // n_shards
    n_chunks = seq_len // t_chunk

    kernel = make_fused_recurrence_kernel(cell_type, num_layers, hidden_p,
                                          t_chunk, compute_dtype)

    weight_specs = [pl.BlockSpec(w.shape, lambda c, tc: (0, 0))
                    for w in cell_weights]           # resident, constant index

    grid_spec = pltpu.PrefetchScalarGridSpec(
        num_scalar_prefetch=0,
        grid=(n_shards, n_chunks),
        in_specs=[
            pl.BlockSpec((t_chunk, b_shard, gate_width), lambda c, tc: (tc, c, 0)),
            pl.BlockSpec((num_layers, b_shard, hidden_p), lambda c, tc: (0, c, 0)),
        ] + weight_specs,
        out_specs=[
            pl.BlockSpec((t_chunk, b_shard, hidden_p), lambda c, tc: (tc, c, 0)),
            pl.BlockSpec((num_layers, b_shard, hidden_p), lambda c, tc: (0, c, 0)),
        ],
    )

    return pl.pallas_call(
        kernel,
        out_shape=(jax.ShapeDtypeStruct((seq_len, batch, hidden_p), jnp.float32),
                   jax.ShapeDtypeStruct((num_layers, batch, hidden_p), jnp.float32)),
        grid_spec=grid_spec,
        compiler_params=pltpu.CompilerParams(
            dimension_semantics=("parallel", "arbitrary"),
            vmem_limit_bytes=_VMEM_LIMIT),
    )(xpre0, h_init, *cell_weights)


# --------------------------- parameter construction ------------------------ #

def init_params(key, config):
    """Raw torch-style parameters (weights [in+H, H] with rows = [x ; h])."""
    V = config["vocabulary_size"]
    E = config["embedding_size"]
    F = config["VggFc7Size"]
    H = config["hidden_state_sizes"]
    L = config["num_rnn_layers"]
    cell_type = config["cellType"]

    keys = iter(jax.random.split(key, 128))
    params = {}
    params["embedding"] = jax.random.normal(next(keys), (V, E), jnp.float32)
    params["in_w"] = jax.random.normal(next(keys), (F, H), jnp.float32) / jnp.sqrt(F)
    params["in_b"] = jax.random.normal(next(keys), (1, H), jnp.float32) * 0.1
    params["out_w"] = jax.random.normal(next(keys), (H, V), jnp.float32) / jnp.sqrt(H)
    params["out_b"] = jax.random.normal(next(keys), (1, V), jnp.float32) * 0.1

    # NOTE: the torch module initializes biases to zero; random biases are used
    # here purely so the correctness check exercises the bias path.
    cells = []
    for i in range(L):
        in_size = E if i == 0 else H
        std = 1.0 / jnp.sqrt(jnp.float32(H + in_size))
        if cell_type == "GRU":
            cell = {
                "weight_u": jax.random.normal(next(keys), (in_size + H, H), jnp.float32) * std,
                "bias_u": jax.random.normal(next(keys), (1, H), jnp.float32) * 0.1,
                "weight_r": jax.random.normal(next(keys), (in_size + H, H), jnp.float32) * std,
                "bias_r": jax.random.normal(next(keys), (1, H), jnp.float32) * 0.1,
                "weight": jax.random.normal(next(keys), (in_size + H, H), jnp.float32) * std,
                "bias": jax.random.normal(next(keys), (1, H), jnp.float32) * 0.1,
            }
        else:
            cell = {
                "weight": jax.random.normal(next(keys), (in_size + H, H), jnp.float32) * std,
                "bias": jax.random.normal(next(keys), (1, H), jnp.float32) * 0.1,
            }
        cells.append(cell)
    params["cells"] = cells
    return params


def prepare_fused_params(params, config, weight_dtype=jnp.float32):
    """One-time repack: split x/h halves, fuse u||r||c along N, zero-pad H and V
    to 128-lane multiples, and (optionally) cast matmul weights to bf16."""
    E = config["embedding_size"]
    H = config["hidden_state_sizes"]
    L = config["num_rnn_layers"]
    V = config["vocabulary_size"]
    cell_type = config["cellType"]

    Hp = _round_up(H, 128)
    Vp = _round_up(V, 128)

    def pad_cols(w, cols):
        return jnp.pad(w, ((0, 0), (0, cols - w.shape[1])))

    def pad_full(w, rows, cols):
        return jnp.pad(w, ((0, rows - w.shape[0]), (0, cols - w.shape[1])))

    wd = weight_dtype
    fused = {
        "embedding": params["embedding"],
        "in_w": pad_cols(params["in_w"], Hp).astype(wd),
        "in_b": pad_cols(params["in_b"], Hp),                 # biases stay f32
        "out_w": pad_full(params["out_w"], Hp, Vp).astype(wd),
        "out_b": pad_cols(params["out_b"], Vp),
        "compute_dtype": wd,
        "Hp": Hp,
        "Vp": Vp,
    }

    cell_ws = []
    for j in range(L):
        in_size = E if j == 0 else H
        c = params["cells"][j]
        if cell_type == "GRU":
            wux, wuh = c["weight_u"][:in_size], c["weight_u"][in_size:]
            wrx, wrh = c["weight_r"][:in_size], c["weight_r"][in_size:]
            wcx, wch = c["weight"][:in_size], c["weight"][in_size:]
            x_all = jnp.concatenate(
                [pad_cols(wux, Hp), pad_cols(wrx, Hp), pad_cols(wcx, Hp)], axis=1)
            b_all = jnp.concatenate(
                [pad_cols(c["bias_u"], Hp), pad_cols(c["bias_r"], Hp),
                 pad_cols(c["bias"], Hp)], axis=1)
            w_urh = jnp.concatenate(
                [pad_full(wuh, Hp, Hp), pad_full(wrh, Hp, Hp)], axis=1).astype(wd)
            w_ch = pad_full(wch, Hp, Hp).astype(wd)
            if j == 0:
                fused["x0_w"] = x_all.astype(wd)              # [E, 3Hp] (hoisted)
                fused["x0_b"] = b_all                         # [1, 3Hp]
                cell_ws.extend([w_urh, w_ch])
            else:
                cell_ws.extend([pad_full(x_all, Hp, 3 * Hp).astype(wd),
                                b_all, w_urh, w_ch])
        else:
            wx, wh = c["weight"][:in_size], c["weight"][in_size:]
            w_h = pad_full(wh, Hp, Hp).astype(wd)
            if j == 0:
                fused["x0_w"] = pad_cols(wx, Hp).astype(wd)   # [E, Hp] (hoisted)
                fused["x0_b"] = pad_cols(c["bias"], Hp)       # [1, Hp]
                cell_ws.append(w_h)
            else:
                cell_ws.extend([pad_full(wx, Hp, Hp).astype(wd),
                                pad_cols(c["bias"], Hp), w_h])
    fused["cell_weights"] = tuple(cell_ws)
    return fused


# ------------------------------ model forward ------------------------------ #

def image_caption_forward(fused, config, vgg_fc7_features, xTokens,
                          current_hidden_state=None):
    """Training-path forward pass of imageCaptionModel (is_train=True)."""
    L = config["num_rnn_layers"]
    H = config["hidden_state_sizes"]
    V = config["vocabulary_size"]
    cell_type = config["cellType"]
    Hp, Vp = fused["Hp"], fused["Vp"]
    compute_dtype = fused["compute_dtype"]
    batch, seq_len = xTokens.shape

    # input layer: tanh(vgg @ W + b) -> initial hidden state (padded to Hp)
    h0 = tiled_linear(vgg_fc7_features, fused["in_w"], fused["in_b"],
                      activation=jnp.tanh)                         # [B, Hp]
    if current_hidden_state is None:
        h_init = jnp.broadcast_to(h0[None], (L, batch, Hp))
    else:
        h_init = jnp.pad(current_hidden_state.astype(jnp.float32),
                         ((0, 0), (0, 0), (0, Hp - H)))

    # embedding lookup stays in XLA (gather); time-major for the hoisted matmul
    emb_t = jnp.take(fused["embedding"], xTokens.T, axis=0)        # [seq, B, E]

    # hoisted layer-0 x-side gate matmul over ALL timesteps (one big MXU pass)
    xpre0 = tiled_linear(emb_t.reshape(seq_len * batch, -1),
                         fused["x0_w"], fused["x0_b"])
    xpre0 = xpre0.reshape(seq_len, batch, -1)                      # [seq, B, G]

    t_chunk = _pick_time_chunk(seq_len)
    n_shards = _num_batch_shards(batch)
    h_top, h_final = fused_recurrence(
        xpre0, h_init, fused["cell_weights"], cell_type, L, Hp,
        t_chunk=t_chunk, n_shards=n_shards, compute_dtype=compute_dtype)

    # batch-major flatten (tiny transpose) so logits land directly as [B,seq,Vp]
    flat = jnp.transpose(h_top, (1, 0, 2)).reshape(batch * seq_len, Hp)
    logits_p = tiled_linear(flat, fused["out_w"], fused["out_b"])  # [B*seq, Vp]
    logits = logits_p.reshape(batch, seq_len, Vp)[:, :, :V]
    # TODO(synk): in a real pipeline keep the Vp padding and mask it in the loss
    # (saves one memory pass over the ~seq*B*V logits tensor).
    return logits, h_final[:, :, :H]


# ------------------------------ JAX reference ------------------------------ #

def reference_forward(params, config, vgg_fc7_features, xTokens,
                      current_hidden_state=None):
    """Pure-JAX transcription of the PyTorch module (is_train=True)."""
    L = config["num_rnn_layers"]
    cell_type = config["cellType"]
    seq_len = xTokens.shape[1]

    h0 = jnp.tanh(vgg_fc7_features @ params["in_w"] + params["in_b"])
    if current_hidden_state is None:
        states = [h0 for _ in range(L)]
    else:
        states = [current_hidden_state[j] for j in range(L)]

    emb = jnp.take(params["embedding"], xTokens, axis=0)
    logits_steps = []
    for i in range(seq_len):
        cin = emb[:, i, :]
        for j in range(L):
            c = params["cells"][j]
            h = states[j]
            tmp = jnp.concatenate([cin, h], axis=1)
            if cell_type == "GRU":
                u = jax.nn.sigmoid(tmp @ c["weight_u"] + c["bias_u"])
                r = jax.nn.sigmoid(tmp @ c["weight_r"] + c["bias_r"])
                tmp2 = jnp.concatenate([cin, r * h], axis=1)
                cand = jnp.tanh(tmp2 @ c["weight"] + c["bias"])
                h_new = u * h + (1.0 - u) * cand
            else:
                h_new = jnp.tanh(tmp @ c["weight"] + c["bias"])
            states[j] = h_new
            cin = h_new
        logits_steps.append(states[-1] @ params["out_w"] + params["out_b"])
    return jnp.stack(logits_steps, axis=1), jnp.stack(states, axis=0)


# ----------------------------------- main ----------------------------------- #

if __name__ == "__main__":
    base_config = {
        "vocabulary_size": 64,
        "embedding_size": 32,
        "VggFc7Size": 64,
        "hidden_state_sizes": 32,
        "num_rnn_layers": 2,
    }
    batch_size, seq_len = 16, 16   # batch=16 exercises the 2-way batch-shard path

    key = jax.random.PRNGKey(0)
    k_param, k_feat, k_tok = jax.random.split(key, 3)
    vgg_fc7_features = jax.random.normal(
        k_feat, (batch_size, base_config["VggFc7Size"]), jnp.float32)
    xTokens = jax.random.randint(
        k_tok, (batch_size, seq_len), 0, base_config["vocabulary_size"], jnp.int32)

    for cell_type in ("GRU", "RNN"):
        config = dict(base_config, cellType=cell_type)
        params = init_params(k_param, config)
        ref_logits, ref_state = reference_forward(
            params, config, vgg_fc7_features, xTokens)

        # f32 weights: exact-parity check.
        fused = prepare_fused_params(params, config, weight_dtype=jnp.float32)
        logits, final_state = image_caption_forward(
            fused, config, vgg_fc7_features, xTokens)
        jax.block_until_ready((logits, final_state))
        assert logits.shape == (batch_size, seq_len, config["vocabulary_size"])
        assert final_state.shape == (config["num_rnn_layers"], batch_size,
                                     config["hidden_state_sizes"])
        assert jnp.allclose(logits, ref_logits, atol=2e-3, rtol=2e-3), cell_type
        assert jnp.allclose(final_state, ref_state, atol=2e-3, rtol=2e-3), cell_type

        # bf16 MXU weights/activations, f32 accumulation + f32 gate math.
        fused_bf16 = prepare_fused_params(params, config, weight_dtype=jnp.bfloat16)
        logits_bf, state_bf = image_caption_forward(
            fused_bf16, config, vgg_fc7_features, xTokens)
        jax.block_until_ready((logits_bf, state_bf))
        assert jnp.allclose(logits_bf, ref_logits, atol=3e-1, rtol=1e-1), cell_type
        assert jnp.allclose(state_bf, ref_state, atol=3e-1, rtol=1e-1), cell_type

    print("KERNEL_OK")
</pallas_src>

<mosaic_0001>
module attributes {stable_mosaic.version = 11 : i64} {
  func.func @_linear_kernel(%arg0: i32, %arg1: i32, %arg2: memref<16x64xf32, #tpu.memory_space<vmem>>, %arg3: memref<64x128xf32, #tpu.memory_space<vmem>>, %arg4: memref<1x128xf32, #tpu.memory_space<vmem>>, %arg5: memref<16x128xf32, #tpu.memory_space<vmem>>) attributes {dimension_semantics = [#tpu.dimension_semantics<parallel>, #tpu.dimension_semantics<parallel>], iteration_bounds = array<i64: 1, 1>, scalar_prefetch = 0 : i64, scratch_operands = 0 : i64, tpu.core_type = #tpu.core_type<tc>, window_params = [{transform_indices = @transform_0, window_bounds = array<i64: 16, 64>}, {transform_indices = @transform_1, window_bounds = array<i64: 64, 128>}, {transform_indices = @transform_2, window_bounds = array<i64: 1, 128>}, {transform_indices = @transform_3, window_bounds = array<i64: 16, 128>}]} {
    %c0 = arith.constant 0 : index
    %c0_0 = arith.constant 0 : index
    %0 = vector.load %arg3[%c0, %c0_0] : memref<64x128xf32, #tpu.memory_space<vmem>>, vector<64x128xf32>
    %c0_1 = arith.constant 0 : index
    %c0_2 = arith.constant 0 : index
    %1 = vector.load %arg2[%c0_1, %c0_2] : memref<16x64xf32, #tpu.memory_space<vmem>>, vector<16x64xf32>
    %cst = arith.constant dense<0.000000e+00> : vector<16x128xf32>
    %2 = tpu.matmul %1, %0, %cst {dimension_numbers = #tpu.dot_dimension_numbers<[1], [0], [0], [1], [0, 0, 1, 1], [], []>} : vector<16x64xf32>, vector<64x128xf32>, vector<16x128xf32> -> vector<16x128xf32>
    %c0_3 = arith.constant 0 : index
    %c0_4 = arith.constant 0 : index
    %3 = vector.load %arg4[%c0_3, %c0_4] : memref<1x128xf32, #tpu.memory_space<vmem>>, vector<1x128xf32>
    %4 = vector.broadcast %3 : vector<1x128xf32> to vector<16x128xf32>
    %5 = arith.addf %2, %4 : vector<16x128xf32>
    %6 = math.tanh %5 : vector<16x128xf32>
    %c0_5 = arith.constant 0 : index
    %c0_6 = arith.constant 0 : index
    %7 = vector.load %arg5[%c0_5, %c0_6] : memref<16x128xf32, #tpu.memory_space<vmem>>, vector<16x128xf32>
    tpu.vector_store %arg5[%c0_5, %c0_6], %6 {strides = array<i32>} : memref<16x128xf32, #tpu.memory_space<vmem>>, vector<16x128xf32>,
    return
  }
  func.func @transform_0(%arg0: i32, %arg1: i32) -> (i32, i32) {
    %c0_i32 = arith.constant 0 : i32
    %c0_i32_0 = arith.constant 0 : i32
    return %arg0, %c0_i32 : i32, i32
  }
  func.func @transform_1(%arg0: i32, %arg1: i32) -> (i32, i32) {
    %c0_i32 = arith.constant 0 : i32
    %c0_i32_0 = arith.constant 0 : i32
    return %c0_i32, %arg1 : i32, i32
  }
  func.func @transform_2(%arg0: i32, %arg1: i32) -> (i32, i32) {
    %c0_i32 = arith.constant 0 : i32
    %c0_i32_0 = arith.constant 0 : i32
    return %c0_i32, %arg1 : i32, i32
  }
  func.func @transform_3(%arg0: i32, %arg1: i32) -> (i32, i32) {
    %c0_i32 = arith.constant 0 : i32
    return %arg0, %arg1 : i32, i32
  }
}

</mosaic_0001>

<llo_original>
// kernel: tpu_custom_call.1
$region0: #{tpu_custom_call.1}
  #allocation0 [shape = 'u32[]', space=smem, size = 0x4, offset = 0x4, fixed_abs, tag = 'smem constant byte address 0x4 - core index']
  #allocation1 [shape = 'u32[144,128]{1,0:T(1,128)}', space=vmem, size = 0x12000, scoped, tag = 'internal scratch']
  %s0 = inlined_call_operand.hbm [shape: f32[16,64], index: 0, kind: input, shape index: {}]
  %s1 = inlined_call_operand.hbm [shape: f32[64,128], index: 1, kind: input, shape index: {}]
  %s2 = inlined_call_operand.vmem [shape: f32[1,128], index: 2, kind: input, shape index: {}]
  %s3 = inlined_call_operand.hbm [shape: f32[16,128], index: 3, kind: output, shape index: {}]
  %s4 = sld [smem:[#allocation0]]
  $region30: #{tpu_custom_call.1} parent=0
    _
  %s6 = ssub.s32 1, %s4
  %s7 = scalar_select 0, %s6, %s4
  $region1: #{tpu_custom_call.1} parent=0
    #allocation2 [shape = 'u8[8192]{0}', space=vmem, size = 0x2000, scoped, tag = 'input window, operand 0, single buffered']
    #allocation3 [shape = 's32[1]{0}', space=sflag, size = 0x4, scoped, tag = 'scoped memory for tpu_custom_call.1']
    #allocation4 [shape = 's32[1]{0}', space=sflag, size = 0x4, scoped, tag = 'scoped memory for tpu_custom_call.1']
    #allocation5 [shape = 'u8[32768]{0}', space=vmem, size = 0x8000, scoped, tag = 'input window, operand 1, single buffered']
    #allocation6 [shape = 's32[1]{0}', space=sflag, size = 0x4, scoped, tag = 'scoped memory for tpu_custom_call.1']
    #allocation7 [shape = 'u8[8192]{0}', space=vmem, size = 0x2000, scoped, tag = 'output window, operand 0, single buffered']
    %8 = vsyncpa [#allocation3], 0
    %9 = vsyncpa [#allocation6], 0
    %10 = vsyncpa [#allocation4], 0
    // Predicated region
    $region2: #{tpu_custom_call.1} parent=1 // pred_check
      _
    $region3: #{tpu_custom_call.1} parent=1 // pred_check_branch
      %12 = sbr.rel (0) target = $region5
    $region4: #{tpu_custom_call.1} parent=1 // pred_region
      %s14 = ssub.s32 256, 256
      %15 = vsyncadd [#allocation3], %s14
      %s16 = sshll.u32 [#allocation2], 4
      %s17 = int_to_ptr.vmem [resolvable:$true] %s16
      %22 = dma.hbm_to_vmem [thread:$0]  %s0, 256, %s17, [#allocation3], 128, 128, 8
    $region5: #{tpu_custom_call.1} parent=1 // pred_fallthru
      _
    // Predicated region
    $region6: #{tpu_custom_call.1} parent=1 // pred_check
      _
    $region7: #{tpu_custom_call.1} parent=1 // pred_check_branch
      %24 = sbr.rel (0) target = $region9
    $region8: #{tpu_custom_call.1} parent=1 // pred_region
      %s26 = ssub.s32 1024, 1024
      %27 = vsyncadd [#allocation6], %s26
      %s28 = sshll.u32 [#allocation5], 4
      %s29 = int_to_ptr.vmem [resolvable:$true] %s28
      %34 = dma.hbm_to_vmem [thread:$0]  %s1, 1024, %s29, [#allocation6], 128, 128, 8
    $region9: #{tpu_custom_call.1} parent=1 // pred_fallthru
      _
    // Predicated region
    $region10: #{tpu_custom_call.1} parent=1 // pred_check
      _
    $region11: #{tpu_custom_call.1} parent=1 // pred_check_branch
      %36 = sbr.rel (0) target = $region13
    $region12: #{tpu_custom_call.1} parent=1 // pred_region
      _
    $region13: #{tpu_custom_call.1} parent=1 // pred_fallthru
      _
    // Predicated region
    $region14: #{tpu_custom_call.1} parent=1 // pred_check
      _
    $region15: #{tpu_custom_call.1} parent=1 // pred_check_branch
      %38 = sbr.rel (0) target = $region17
    $region16: #{tpu_custom_call.1} parent=1 // pred_region
      %39 = dma.done [#allocation3], 256
    $region17: #{tpu_custom_call.1} parent=1 // pred_fallthru
      _
    // Predicated region
    $region18: #{tpu_custom_call.1} parent=1 // pred_check
      _
    $region19: #{tpu_custom_call.1} parent=1 // pred_check_branch
      %41 = sbr.rel (0) target = $region21
    $region20: #{tpu_custom_call.1} parent=1 // pred_region
      %42 = dma.done [#allocation6], 1024
    $region21: #{tpu_custom_call.1} parent=1 // pred_fallthru
      _
    %v43 = vld [vmem:[#allocation5] sm:$0xff]
    %v44 = vld [vmem:[#allocation5 + $0x8] sm:$0xff]
    %v45 = vld [vmem:[#allocation5 + $0x10] sm:$0xff]
    %v46 = vld [vmem:[#allocation5 + $0x18] sm:$0xff]
    %v47 = vld [vmem:[#allocation5 + $0x20] sm:$0xff]
    %v48 = vld [vmem:[#allocation5 + $0x28] sm:$0xff]
    %v49 = vld [vmem:[#allocation5 + $0x30] sm:$0xff]
    %v50 = vld [vmem:[#allocation5 + $0x38] sm:$0xff]
    %v51 = vld [vmem:[#allocation2] sm:$0xff]
    %v52 = vld [vmem:[#allocation2 + $0x8] sm:$0xff]
    %v53 = vld [vmem:[%s2] sm:$0x1]
    %v55 = vlaneseq
    %v56 = vshrl.u32 %v55, 7
    %v57 = vsub.s32 0, %v56
    %v58 = vrot.slane %v53, %v57
    %vm60 = vcmask 523264
    %v62 = vsel %vm60, %v51, 0
    %v65 = vsel %vm60, %v52, 0
    %67 = vmatprep.subr.mxu0 0.0
    %68 = vmatpush1.msra.mxu0 0.0
    %69 = vmatprep.subr.mxu0 0.0
    %70 = vmatpush1.msra.mxu0 0.0
    %71 = vmatprep.subr.mxu0 0.0
    %72 = vmatpush1.msra.mxu0 0.0
    %73 = vmatprep.subr.mxu0 0.0
    %74 = vmatpush1.msra.mxu0 0.0
    %75 = vmatprep.subr.mxu0 0.0
    %76 = vmatpush1.msra.mxu0 0.0
    %77 = vmatprep.subr.mxu0 0.0
    %78 = vmatpush1.msra.mxu0 0.0
    %79 = vmatprep.subr.mxu0 0.0
    %80 = vmatpush1.msra.mxu0 0.0
    %81 = vmatprep.subr.mxu0 0.0
    %82 = vmatpush1.msra.mxu0 0.0
    %83 = vmatprep.subr.mxu0 0.0
    %84 = vmatpush1.msra.mxu0 %v50
    %85 = vmatprep.subr.mxu0 0.0
    %86 = vmatpush1.msra.mxu0 %v49
    %87 = vmatprep.subr.mxu0 0.0
    %88 = vmatpush1.msra.mxu0 %v48
    %89 = vmatprep.subr.mxu0 0.0
    %90 = vmatpush1.msra.mxu0 %v47
    %91 = vmatprep.subr.mxu0 0.0
    %92 = vmatpush1.msra.mxu0 %v46
    %93 = vmatprep.subr.mxu0 0.0
    %94 = vmatpush1.msra.mxu0 %v45
    %95 = vmatprep.subr.mxu0 0.0
    %96 = vmatpush1.msra.mxu0 %v44
    %97 = vmatprep.subr.mxu0 0.0
    %98 = vmatpush1.msra.mxu0 %v43
    %99 = vmatprep.subr.mxu0 0.0
    %100 = vmatpush2.msra.mxu0 0.0
    %101 = vmatprep.subr.mxu0 0.0
    %102 = vmatpush2.msra.mxu0 0.0
    %103 = vmatprep.subr.mxu0 0.0
    %104 = vmatpush2.msra.mxu0 0.0
    %105 = vmatprep.subr.mxu0 0.0
    %106 = vmatpush2.msra.mxu0 0.0
    %107 = vmatprep.subr.mxu0 0.0
    %108 = vmatpush2.msra.mxu0 0.0
    %109 = vmatprep.subr.mxu0 0.0
    %110 = vmatpush2.msra.mxu0 0.0
    %111 = vmatprep.subr.mxu0 0.0
    %112 = vmatpush2.msra.mxu0 0.0
    %113 = vmatprep.subr.mxu0 0.0
    %114 = vmatpush2.msra.mxu0 0.0
    %115 = vmatprep.subr.mxu0 0.0
    %116 = vmatpush2.msra.mxu0 0.0
    %117 = vmatprep.subr.mxu0 0.0
    %118 = vmatpush2.msra.mxu0 0.0
    %119 = vmatprep.subr.mxu0 0.0
    %120 = vmatpush2.msra.mxu0 0.0
    %121 = vmatprep.subr.mxu0 0.0
    %122 = vmatpush2.msra.mxu0 0.0
    %123 = vmatprep.subr.mxu0 0.0
    %124 = vmatpush2.msra.mxu0 0.0
    %125 = vmatprep.subr.mxu0 0.0
    %126 = vmatpush2.msra.mxu0 0.0
    %127 = vmatprep.subr.mxu0 0.0
    %128 = vmatpush2.msra.mxu0 0.0
    %129 = vmatprep.subr.mxu0 0.0
    %130 = vmatpush2.msra.mxu0 0.0
    %131 = vmatprep.mubr.f32.mxu0 0.0
    %132 = vmatmul.mubr.f32.gmra.mxu0 %v62
    %v133 = vpop.f32.mrf.mxu0
    %v134 = vadd.f32 %v58, %v133
    %v135 = vpop.f32.mrf.mxu0
    %136 = vmatprep.mubr.f32.mxu0 0.0
    %137 = vmatmul.mubr.f32.gmra.mxu0 %v65
    %v138 = vpop.f32.mrf.mxu0
    %v139 = vadd.f32 %v58, %v138
    %v140 = vpop.f32.mrf.mxu0
    %141 = vdwg.mxu0
    %v142 = vtanh.pop %v134
    %v143 = vtanh.pop %v139
    %144 = vst [vmem:[#allocation7] sm:$0xff] %v142
    %145 = vst [vmem:[#allocation7 + $0x8] sm:$0xff] %v143
    // Predicated region
    $region22: #{tpu_custom_call.1} parent=1 // pred_check
      _
    $region23: #{tpu_custom_call.1} parent=1 // pred_check_branch
      %147 = sbr.rel (0) target = $region25
    $region24: #{tpu_custom_call.1} parent=1 // pred_region
      %s149 = ssub.s32 256, 256
      %150 = vsyncadd [#allocation4], %s149
      %s151 = sshll.u32 [#allocation7], 4
      %s152 = int_to_ptr.vmem [resolvable:$true] %s151
      %157 = dma.vmem_to_hbm [thread:$0]  %s152, 256, %s3, [#allocation4], 128, 128, 8
    $region25: #{tpu_custom_call.1} parent=1 // pred_fallthru
      _
    // Predicated region
    $region26: #{tpu_custom_call.1} parent=1 // pred_check
      _
    $region27: #{tpu_custom_call.1} parent=1 // pred_check_branch
      %159 = sbr.rel (0) target = $region29
    $region28: #{tpu_custom_call.1} parent=1 // pred_region
      %160 = dma.done [#allocation4], 256
    $region29: #{tpu_custom_call.1} parent=1 // pred_fallthru
      _
    %161 = vsyncpa [#allocation3], 1
    %162 = vsyncpa [#allocation6], 1
    %163 = vsyncpa [#allocation4], 1

</llo_original>
